<compile_context>
chip_gen: v5e
topology: v5e:2x2
jax: 0.10.0
libtpu: 0.0.40
codegen_flags: <defaults>
</compile_context>

<pallas_src>
import functools

import jax
import jax.numpy as jnp
from jax.experimental import pallas as pl
from jax.experimental.pallas import tpu as pltpu


def _round_up(x: int, m: int) -> int:
    return ((x + m - 1) // m) * m


def _pairwise_diff_kernel(ucol_ref, urow_ref, rowsum_ref, *,
                          norm: str, margin: float, B: int,
                          TM: int, TN: int, need_mask: bool):
    i = pl.program_id(0)   # row-block index ("parallel")
    j = pl.program_id(1)   # col-block index ("arbitrary" reduction axis)

    # The (TM, 1) output block stays resident across j; zero it once per row block.
    @pl.when(j == 0)
    def _():
        rowsum_ref[...] = jnp.zeros_like(rowsum_ref)

    # d[r, c] = u[i*TM + r] - u[j*TN + c]   via (TM,1) - (1,TN) broadcast (VPU).
    d = ucol_ref[...] - urow_ref[...]
    nd = jnp.abs(d) if norm == "l1" else d * d
    loss = jnp.maximum(nd - margin, 0.0)

    if need_mask:  # compile-time decision: only traced when B isn't tile-aligned
        rid = jax.lax.broadcasted_iota(jnp.int32, (TM, TN), 0) + i * TM
        cid = jax.lax.broadcasted_iota(jnp.int32, (TM, TN), 1) + j * TN
        loss = jnp.where((rid < B) & (cid < B), loss, 0.0)

    # Lane-axis (XLU) reduce to per-row partial sums; accumulate over col tiles.
    rowsum_ref[...] += jnp.sum(loss, axis=-1, keepdims=True)


def pairwize_diff_loss(inp: jax.Array, tgt: jax.Array,
                       margin: float = 0.2, norm: str = "l1") -> jax.Array:
    if norm not in ("l1", "l2_squared"):
        raise ValueError(
            f'Unknown norm: {norm}. Must be one of ["l1", "l2_squared"]')

    B = inp.shape[0]

    # Algebraic identity: (x_i - x_j) - (t_i - t_j) = u_i - u_j,  u = x - t.
    # This O(B) subtract fuses under jit and removes two of the three (B,B)
    # elementwise passes from the kernel's hot path.
    u = inp.astype(jnp.float32) - tgt.astype(jnp.float32)

    # Tile sizes: second-minor a multiple of 8, lane dim a multiple of 128;
    # TM*TN <= 128*256 f32 keeps the live (TM,TN) intermediate vreg-resident.
    TM = min(128, _round_up(B, 8))
    TN = min(256, _round_up(B, 128))
    Bm = _round_up(B, TM)
    Bn = _round_up(B, TN)
    need_mask = (Bm != B) or (Bn != B)

    u_pad_m = jnp.pad(u, (0, Bm - B)) if Bm != B else u
    u_pad_n = jnp.pad(u, (0, Bn - B)) if Bn != B else u
    u_col = u_pad_m.reshape(Bm, 1)   # column operand for the broadcast
    u_row = u_pad_n.reshape(1, Bn)   # lane-dense row operand

    grid = (Bm // TM, Bn // TN)

    kernel = functools.partial(
        _pairwise_diff_kernel, norm=norm, margin=float(margin), B=B,
        TM=TM, TN=TN, need_mask=need_mask)

    row_sums = pl.pallas_call(
        kernel,
        out_shape=jax.ShapeDtypeStruct((Bm, 1), jnp.float32),
        grid_spec=pltpu.PrefetchScalarGridSpec(
            num_scalar_prefetch=0,
            grid=grid,
            in_specs=[
                pl.BlockSpec((TM, 1), lambda i, j: (i, 0)),
                pl.BlockSpec((1, TN), lambda i, j: (0, j)),
            ],
            out_specs=pl.BlockSpec((TM, 1), lambda i, j: (i, 0)),
        ),
        compiler_params=pltpu.CompilerParams(
            dimension_semantics=("parallel", "arbitrary")),
    )(u_col, u_row)

    # Final O(B) reduce + scale by precomputed 1/(B*B*2): mean over B*B, then /2.
    # (Padded rows/cols were masked to 0 in-kernel, denominator uses the true B.)
    inv_denom = 1.0 / (float(B) * float(B) * 2.0)
    return jnp.sum(row_sums) * inv_denom


def _reference(inp, tgt, margin=0.2, norm="l1"):
    s = inp[:, None] - inp[None, :]
    t = tgt[:, None] - tgt[None, :]
    d = s - t
    nd = jnp.abs(d) if norm == "l1" else d * d
    return jnp.maximum(nd - margin, 0.0).mean() / 2.0


if __name__ == "__main__":
    key = jax.random.PRNGKey(0)

    # B=16: the real use-case shape (single tile).  B=200: exercises the tiled
    # grid (2 row blocks) and the ragged-padding mask path.
    for B in (16, 200):
        k1, k2 = jax.random.split(jax.random.fold_in(key, B))
        inp = jax.random.uniform(k1, (B,), jnp.float32, minval=1.0, maxval=5.0)
        tgt = jax.random.uniform(k2, (B,), jnp.float32, minval=1.0, maxval=5.0)
        for norm in ("l1", "l2_squared"):
            out = jax.block_until_ready(pairwize_diff_loss(inp, tgt, 0.2, norm))
            ref = _reference(inp, tgt, 0.2, norm)
            assert jnp.allclose(out, ref, rtol=1e-5, atol=1e-6), (B, norm, out, ref)

    print("KERNEL_OK")
</pallas_src>

<mosaic_0001>
module attributes {stable_mosaic.version = 11 : i64} {
  func.func @_pairwise_diff_kernel(%arg0: i32, %arg1: i32, %arg2: memref<16x1xf32, #tpu.memory_space<vmem>>, %arg3: memref<1x128xf32, #tpu.memory_space<vmem>>, %arg4: memref<16x1xf32, #tpu.memory_space<vmem>>) attributes {dimension_semantics = [#tpu.dimension_semantics<parallel>, #tpu.dimension_semantics<arbitrary>], iteration_bounds = array<i64: 1, 1>, scalar_prefetch = 0 : i64, scratch_operands = 0 : i64, tpu.core_type = #tpu.core_type<tc>, window_params = [{transform_indices = @transform_0, window_bounds = array<i64: 16, 1>}, {transform_indices = @transform_1, window_bounds = array<i64: 1, 128>}, {transform_indices = @transform_2, window_bounds = array<i64: 16, 1>}]} {
    %c0_i32 = arith.constant 0 : i32
    %0 = arith.cmpi eq, %arg1, %c0_i32 : i32
    %1 = arith.extui %0 : i1 to i32
    %c0_i32_0 = arith.constant 0 : i32
    %2 = arith.cmpi ne, %1, %c0_i32_0 : i32
    scf.if %2 {
      %cst_13 = arith.constant 0.000000e+00 : f32
      %33 = vector.broadcast %cst_13 : f32 to vector<16x1xf32>
      %c0_14 = arith.constant 0 : index
      %c0_15 = arith.constant 0 : index
      %34 = vector.load %arg4[%c0_14, %c0_15] : memref<16x1xf32, #tpu.memory_space<vmem>>, vector<16x1xf32>
      tpu.vector_store %arg4[%c0_14, %c0_15], %33 {strides = array<i32>} : memref<16x1xf32, #tpu.memory_space<vmem>>, vector<16x1xf32>,
    } else {
    }
    %c0 = arith.constant 0 : index
    %c0_1 = arith.constant 0 : index
    %3 = vector.load %arg2[%c0, %c0_1] : memref<16x1xf32, #tpu.memory_space<vmem>>, vector<16x1xf32>
    %c0_2 = arith.constant 0 : index
    %c0_3 = arith.constant 0 : index
    %4 = vector.load %arg3[%c0_2, %c0_3] : memref<1x128xf32, #tpu.memory_space<vmem>>, vector<1x128xf32>
    %5 = vector.broadcast %3 : vector<16x1xf32> to vector<16x128xf32>
    %6 = vector.broadcast %4 : vector<1x128xf32> to vector<16x128xf32>
    %7 = arith.subf %5, %6 : vector<16x128xf32>
    %8 = math.absf %7 : vector<16x128xf32>
    %cst = arith.constant 2.000000e-01 : f32
    %9 = vector.broadcast %cst : f32 to vector<16x128xf32>
    %10 = arith.subf %8, %9 : vector<16x128xf32>
    %cst_4 = arith.constant 0.000000e+00 : f32
    %11 = vector.broadcast %cst_4 : f32 to vector<16x128xf32>
    %12 = arith.maximumf %10, %11 : vector<16x128xf32>
    %13 = tpu.iota {dimensions = array<i32: 0>} : vector<16x128xi32>
    %c16_i32 = arith.constant 16 : i32
    %14 = arith.muli %arg0, %c16_i32 : i32
    %15 = vector.broadcast %14 : i32 to vector<16x128xi32>
    %16 = arith.addi %13, %15 : vector<16x128xi32>
    %17 = tpu.iota {dimensions = array<i32: 1>} : vector<16x128xi32>
    %c128_i32 = arith.constant 128 : i32
    %18 = arith.muli %arg1, %c128_i32 : i32
    %19 = vector.broadcast %18 : i32 to vector<16x128xi32>
    %20 = arith.addi %17, %19 : vector<16x128xi32>
    %c16_i32_5 = arith.constant 16 : i32
    %21 = vector.broadcast %c16_i32_5 : i32 to vector<16x128xi32>
    %22 = arith.cmpi slt, %16, %21 : vector<16x128xi32>
    %c16_i32_6 = arith.constant 16 : i32
    %23 = vector.broadcast %c16_i32_6 : i32 to vector<16x128xi32>
    %24 = arith.cmpi slt, %20, %23 : vector<16x128xi32>
    %25 = arith.andi %22, %24 : vector<16x128xi1>
    %cst_7 = arith.constant 0.000000e+00 : f32
    %26 = vector.broadcast %cst_7 : f32 to vector<16x128xf32>
    %27 = arith.select %25, %12, %26 : vector<16x128xi1>, vector<16x128xf32>
    %c0_8 = arith.constant 0 : index
    %c0_9 = arith.constant 0 : index
    %28 = vector.load %arg4[%c0_8, %c0_9] : memref<16x1xf32, #tpu.memory_space<vmem>>, vector<16x1xf32>
    %cst_10 = arith.constant dense<0.000000e+00> : vector<16xf32>
    %29 = vector.multi_reduction <add>, %27, %cst_10 [1] : vector<16x128xf32> to vector<16xf32>
    %30 = vector.shape_cast %29 : vector<16xf32> to vector<16x1xf32>
    %31 = arith.addf %28, %30 : vector<16x1xf32>
    %c0_11 = arith.constant 0 : index
    %c0_12 = arith.constant 0 : index
    %32 = vector.load %arg4[%c0_11, %c0_12] : memref<16x1xf32, #tpu.memory_space<vmem>>, vector<16x1xf32>
    tpu.vector_store %arg4[%c0_11, %c0_12], %31 {strides = array<i32>} : memref<16x1xf32, #tpu.memory_space<vmem>>, vector<16x1xf32>,
    return
  }
  func.func @transform_0(%arg0: i32, %arg1: i32) -> (i32, i32) {
    %c0_i32 = arith.constant 0 : i32
    %c0_i32_0 = arith.constant 0 : i32
    return %arg0, %c0_i32 : i32, i32
  }
  func.func @transform_1(%arg0: i32, %arg1: i32) -> (i32, i32) {
    %c0_i32 = arith.constant 0 : i32
    %c0_i32_0 = arith.constant 0 : i32
    return %c0_i32, %arg1 : i32, i32
  }
  func.func @transform_2(%arg0: i32, %arg1: i32) -> (i32, i32) {
    %c0_i32 = arith.constant 0 : i32
    %c0_i32_0 = arith.constant 0 : i32
    return %arg0, %c0_i32 : i32, i32
  }
}

</mosaic_0001>

<llo_original>
// kernel: tpu_custom_call.1
$region0: #{tpu_custom_call.1}
  #allocation0 [shape = 'u32[]', space=smem, size = 0x4, offset = 0x4, fixed_abs, tag = 'smem constant byte address 0x4 - core index']
  #allocation1 [shape = 'u32[72,128]{1,0:T(1,128)}', space=vmem, size = 0x9000, scoped, tag = 'internal scratch']
  %s0 = inlined_call_operand.vmem [shape: f32[16,1], index: 0, kind: input, shape index: {}]
  %s1 = inlined_call_operand.vmem [shape: f32[1,128], index: 1, kind: input, shape index: {}]
  %s2 = inlined_call_operand.vmem [shape: f32[16,1], index: 2, kind: output, shape index: {}]
  %s3 = sld [smem:[#allocation0]]
  $region22: #{tpu_custom_call.1} parent=0
    _
  %s5 = ssub.s32 1, %s3
  %s6 = scalar_select 0, %s5, %s3
  // Predicated region
  $region2: #{tpu_custom_call.1} parent=0 // pred_check
    _
  $region3: #{tpu_custom_call.1} parent=0 // pred_check_branch
    %8 = sbr.rel (0) target = $region5
  $region4: #{tpu_custom_call.1} parent=0 // pred_region
    _
  $region5: #{tpu_custom_call.1} parent=0 // pred_fallthru
    _
  // Predicated region
  $region6: #{tpu_custom_call.1} parent=0 // pred_check
    _
  $region7: #{tpu_custom_call.1} parent=0 // pred_check_branch
    %10 = sbr.rel (0) target = $region9
  $region8: #{tpu_custom_call.1} parent=0 // pred_region
    _
  $region9: #{tpu_custom_call.1} parent=0 // pred_fallthru
    _
  %p11 = scmp.eq.s32.totalorder 0, 0
  // Predicated region
  $region10: #{tpu_custom_call.1} parent=0 // pred_check
    %p12 = pneg %p11
  $region11: #{tpu_custom_call.1} parent=0 // pred_check_branch
    %14 = sbr.rel (%p12) target = $region13
  $region12: #{tpu_custom_call.1} parent=0 // pred_region
    %vm15 = vcmask 7168
    %16 = vst.msk [vmem:[%s2] sm:$0xff] %vm15, 0.0
    %17 = vst.msk [vmem:[%s2 + $0x8] sm:$0xff] %vm15, 0.0
  $region13: #{tpu_custom_call.1} parent=0 // pred_fallthru
    _
  %v18 = vld [vmem:[%s0] sm:$0xff]
  %v19 = vld [vmem:[%s0 + $0x8] sm:$0xff]
  %v20 = vld [vmem:[%s1] sm:$0x1]
  %22 = vset.pattern.permute.xlu0 0
  %23 = vperm.xlu0 %22, %v18
  %v24 = vpop.permute.xlu0 %23
  %27 = vset.pattern.permute.xlu0 0
  %28 = vperm.xlu0 %27, %v19
  %v29 = vpop.permute.xlu0 %28
  %v32 = vperm.slane %v20, 0
  %v34 = vsub.f32 %v24, %v32
  %v35 = vsub.f32 %v29, %v32
  %v36 = vand.u32 2147483647, %v34
  %v37 = vand.u32 2147483647, %v35
  %v38 = vsub.f32 %v36, 0.2
  %v39 = vsub.f32 %v37, 0.2
  %v40 = vmax.f32 %v38, 0.0
  %v41 = vmax.f32 %v39, 0.0
  %v42 = vlaneseq
  %v43 = vshrl.u32 %v42, 7
  %v44 = vadd.s32 %v43, 8
  %s45 = smul.u32 0, 16
  %v46 = vstv %s45
  %v47 = vadd.s32 %v43, %v46
  %v48 = vadd.s32 %v44, %v46
  %v49 = vlaneseq
  %v50 = vand.u32 %v49, 127
  %s51 = smul.u32 0, 128
  %v52 = vstv %s51
  %v53 = vadd.s32 %v50, %v52
  %vm54 = vcmp.lt.s32.totalorder %v47, 16
  %vm55 = vcmp.lt.s32.totalorder %v48, 16
  %vm56 = vcmp.lt.s32.totalorder %v53, 16
  %vm57 = vmand %vm54, %vm56
  %vm58 = vmand %vm55, %vm56
  %v59 = vsel %vm57, %v40, 0.0
  %v60 = vsel %vm58, %v41, 0.0
  %v61 = vld [vmem:[%s2] sm:$0xff]
  %v62 = vld [vmem:[%s2 + $0x8] sm:$0xff]
  %63 = vadd.xlane.f32.xlu0 %v59
  %v64 = vpop.xlane.xlu0 %63
  %65 = vadd.xlane.f32.xlu0 %v60
  %v66 = vpop.xlane.xlu0 %65
  %v67 = vadd.f32 %v61, %v64
  %v68 = vadd.f32 %v62, %v66
  %vm69 = vcmask 7168
  %70 = vst.msk [vmem:[%s2] sm:$0xff] %vm69, %v67
  %71 = vst.msk [vmem:[%s2 + $0x8] sm:$0xff] %vm69, %v68
  // Predicated region
  $region14: #{tpu_custom_call.1} parent=0 // pred_check
    _
  $region15: #{tpu_custom_call.1} parent=0 // pred_check_branch
    %73 = sbr.rel (0) target = $region17
  $region16: #{tpu_custom_call.1} parent=0 // pred_region
    _
  $region17: #{tpu_custom_call.1} parent=0 // pred_fallthru
    _
  // Predicated region
  $region18: #{tpu_custom_call.1} parent=0 // pred_check
    _
  $region19: #{tpu_custom_call.1} parent=0 // pred_check_branch
    %75 = sbr.rel (0) target = $region21
  $region20: #{tpu_custom_call.1} parent=0 // pred_region
    _
  $region21: #{tpu_custom_call.1} parent=0 // pred_fallthru
    _

</llo_original>
